<compile_context>
chip_gen: v5e
topology: v5e:2x2
jax: 0.10.0
libtpu: 0.0.40
codegen_flags: <defaults>
</compile_context>

<pallas_src>
import math
from functools import partial

import jax
import jax.numpy as jnp
from jax.experimental import pallas as pl
from jax.experimental.pallas import tpu as pltpu

LANES = 128
SUBLANES = 8
PARTIALS = 2          # outer parallel axis (uses both TCs on v7x; free elsewhere)
R_MILES = 3956.0
SCALE_DENOM = 3300.0


def _haversine_kernel(preds_ref, targets_ref, out_ref, acc_ref):
    # preds_ref / targets_ref: (2, tile_m, 128) f32 VMEM blocks (row 0 = lat deg, row 1 = lon deg)
    # out_ref: (8, 128) f32 VMEM block (one per partial); acc_ref: (1, 1) f32 VMEM scratch.
    t = pl.program_id(1)

    @pl.when(t == 0)
    def _init():
        acc_ref[...] = jnp.zeros_like(acc_ref)

    half_rad = jnp.float32(math.pi / 360.0)   # deg->rad and the /2 folded together
    deg2rad = jnp.float32(math.pi / 180.0)

    lat1 = preds_ref[0]       # (tile_m, 128), degrees
    lon1 = preds_ref[1]
    lat2 = targets_ref[0]
    lon2 = targets_ref[1]

    sin_dlat = jnp.sin((lat2 - lat1) * half_rad)
    sin_dlon = jnp.sin((lon2 - lon1) * half_rad)
    a = sin_dlat * sin_dlat + jnp.cos(lat1 * deg2rad) * jnp.cos(lat2 * deg2rad) * (sin_dlon * sin_dlon)
    a = jnp.clip(a, jnp.float32(0.0), jnp.float32(1.0))

    # arcsin(sqrt(a)) == atan2(sqrt(a), sqrt(1 - a))  (EUP-friendly formulation)
    c = jnp.arctan2(jnp.sqrt(a), jnp.sqrt(jnp.float32(1.0) - a))

    acc_ref[...] += jnp.sum(c, keepdims=True)

    @pl.when(t == pl.num_programs(1) - 1)
    def _finalize():
        # Lane-dense store of this partial's raw sum of arcsin values.
        out_ref[...] = jnp.broadcast_to(acc_ref[...], out_ref.shape)


def haversine_loss(preds, targets, tile_m=512):
    """preds, targets: (N, 2) float32 arrays of [lat_deg, lon_deg] rows."""
    preds = jnp.asarray(preds, jnp.float32)
    targets = jnp.asarray(targets, jnp.float32)
    n = preds.shape[0]

    # Sublane rows needed at 128 points per row, rounded up to a multiple of 8.
    m_needed = -(-n // LANES)
    m_needed = max(SUBLANES, -(-m_needed // SUBLANES) * SUBLANES)
    tile_m = min(tile_m, m_needed)                       # both multiples of 8
    chunk = PARTIALS * tile_m
    m = -(-m_needed // chunk) * chunk                    # rows, split evenly across partials/tiles
    n_pad = m * LANES
    tiles_per_partial = m // (PARTIALS * tile_m)

    def pack(x):
        # Zero-pad identically in both inputs -> padded points contribute exactly 0.
        x = jnp.pad(x, ((0, n_pad - n), (0, 0)))
        return x.T.reshape(2, m, LANES)

    preds_p = pack(preds)
    targets_p = pack(targets)

    in_map = lambda p, t: (0, p * tiles_per_partial + t, 0)
    out_map = lambda p, t: (p, 0)

    out = pl.pallas_call(
        _haversine_kernel,
        out_shape=jax.ShapeDtypeStruct((PARTIALS * SUBLANES, LANES), jnp.float32),
        grid_spec=pltpu.PrefetchScalarGridSpec(
            num_scalar_prefetch=0,
            grid=(PARTIALS, tiles_per_partial),
            in_specs=[
                pl.BlockSpec((2, tile_m, LANES), in_map),
                pl.BlockSpec((2, tile_m, LANES), in_map),
            ],
            out_specs=pl.BlockSpec((SUBLANES, LANES), out_map),
            scratch_shapes=[pltpu.VMEM((1, 1), jnp.float32)],
        ),
        compiler_params=pltpu.CompilerParams(
            dimension_semantics=("parallel", "arbitrary"),
            vmem_limit_bytes=32 * 1024 * 1024,
        ),
    )(preds_p, targets_p)

    # One partial raw-sum per outer grid index (replicated across its (8,128) tile).
    partials = out.reshape(PARTIALS, SUBLANES, LANES)[:, 0, 0]
    # Fold 2 * R / (3300 * N_total) into a single final scalar multiply.
    scale = jnp.float32(2.0 * R_MILES / (SCALE_DENOM * n))
    return jnp.sum(partials) * scale


def _reference(preds, targets):
    # Pure-JAX reference mirroring the PyTorch forward.
    R = 3956.0
    pi = jnp.float32(math.pi)
    lat1 = preds[:, 0] * (pi / 180)
    lon1 = preds[:, 1] * (pi / 180)
    lat2 = targets[:, 0] * (pi / 180)
    lon2 = targets[:, 1] * (pi / 180)
    dlat = lat2 - lat1
    dlon = lon2 - lon1
    a = jnp.sin(dlat / 2.0) ** 2 + jnp.cos(lat1) * jnp.cos(lat2) * jnp.sin(dlon / 2.0) ** 2
    c = 2 * jnp.arcsin(jnp.sqrt(a))
    distances = R * c
    return jnp.mean(distances) / 3300


if __name__ == "__main__":
    key = jax.random.PRNGKey(0)
    k1, k2 = jax.random.split(key)
    N = 8
    # Synthetic lat/lon in degrees: lat in [-90, 90), lon in [-180, 180)
    lat_p = jax.random.uniform(k1, (N, 1), jnp.float32, -90.0, 90.0)
    lon_p = jax.random.uniform(k1, (N, 1), jnp.float32, -180.0, 180.0)
    lat_t = jax.random.uniform(k2, (N, 1), jnp.float32, -90.0, 90.0)
    lon_t = jax.random.uniform(k2, (N, 1), jnp.float32, -180.0, 180.0)
    preds = jnp.concatenate([lat_p, lon_p], axis=1)    # (N, 2)
    targets = jnp.concatenate([lat_t, lon_t], axis=1)  # (N, 2)

    loss = haversine_loss(preds, targets)
    jax.block_until_ready(loss)

    ref = _reference(preds, targets)
    assert jnp.allclose(loss, ref, rtol=1e-5, atol=1e-6), (loss, ref)

    print("KERNEL_OK")
</pallas_src>

<mosaic_0001>
module attributes {stable_mosaic.version = 11 : i64} {
  func.func @_haversine_kernel(%arg0: i32, %arg1: i32, %arg2: memref<2x8x128xf32, #tpu.memory_space<vmem>>, %arg3: memref<2x8x128xf32, #tpu.memory_space<vmem>>, %arg4: memref<8x128xf32, #tpu.memory_space<vmem>>, %arg5: memref<1x1xf32, #tpu.memory_space<vmem>>) attributes {dimension_semantics = [#tpu.dimension_semantics<parallel>, #tpu.dimension_semantics<arbitrary>], iteration_bounds = array<i64: 2, 1>, scalar_prefetch = 0 : i64, scratch_operands = 1 : i64, tpu.core_type = #tpu.core_type<tc>, window_params = [{transform_indices = @transform_0, window_bounds = array<i64: 2, 8, 128>}, {transform_indices = @transform_1, window_bounds = array<i64: 2, 8, 128>}, {transform_indices = @transform_2, window_bounds = array<i64: 8, 128>}]} {
    %c0_i32 = arith.constant 0 : i32
    %0 = arith.cmpi eq, %arg1, %c0_i32 : i32
    %1 = arith.extui %0 : i1 to i32
    %c0_i32_0 = arith.constant 0 : i32
    %2 = arith.cmpi ne, %1, %c0_i32_0 : i32
    scf.if %2 {
      %cst_24 = arith.constant 0.000000e+00 : f32
      %50 = vector.broadcast %cst_24 : f32 to vector<1x1xf32>
      %c0_25 = arith.constant 0 : index
      %c0_26 = arith.constant 0 : index
      %51 = vector.load %arg5[%c0_25, %c0_26] : memref<1x1xf32, #tpu.memory_space<vmem>>, vector<1x1xf32>
      tpu.vector_store %arg5[%c0_25, %c0_26], %50 {strides = array<i32>} : memref<1x1xf32, #tpu.memory_space<vmem>>, vector<1x1xf32>,
    } else {
    }
    %c0 = arith.constant 0 : index
    %c0_1 = arith.constant 0 : index
    %c0_2 = arith.constant 0 : index
    %3 = vector.load %arg2[%c0, %c0_1, %c0_2] : memref<2x8x128xf32, #tpu.memory_space<vmem>>, vector<1x8x128xf32>
    %4 = vector.shape_cast %3 : vector<1x8x128xf32> to vector<8x128xf32>
    %c1 = arith.constant 1 : index
    %c0_3 = arith.constant 0 : index
    %c0_4 = arith.constant 0 : index
    %5 = vector.load %arg2[%c1, %c0_3, %c0_4] : memref<2x8x128xf32, #tpu.memory_space<vmem>>, vector<1x8x128xf32>
    %6 = vector.shape_cast %5 : vector<1x8x128xf32> to vector<8x128xf32>
    %c0_5 = arith.constant 0 : index
    %c0_6 = arith.constant 0 : index
    %c0_7 = arith.constant 0 : index
    %7 = vector.load %arg3[%c0_5, %c0_6, %c0_7] : memref<2x8x128xf32, #tpu.memory_space<vmem>>, vector<1x8x128xf32>
    %8 = vector.shape_cast %7 : vector<1x8x128xf32> to vector<8x128xf32>
    %c1_8 = arith.constant 1 : index
    %c0_9 = arith.constant 0 : index
    %c0_10 = arith.constant 0 : index
    %9 = vector.load %arg3[%c1_8, %c0_9, %c0_10] : memref<2x8x128xf32, #tpu.memory_space<vmem>>, vector<1x8x128xf32>
    %10 = vector.shape_cast %9 : vector<1x8x128xf32> to vector<8x128xf32>
    %11 = arith.subf %8, %4 : vector<8x128xf32>
    %cst = arith.constant 0.00872664619 : f32
    %12 = vector.broadcast %cst : f32 to vector<8x128xf32>
    %13 = arith.mulf %11, %12 : vector<8x128xf32>
    %14 = math.sin %13 : vector<8x128xf32>
    %15 = arith.subf %10, %6 : vector<8x128xf32>
    %cst_11 = arith.constant 0.00872664619 : f32
    %16 = vector.broadcast %cst_11 : f32 to vector<8x128xf32>
    %17 = arith.mulf %15, %16 : vector<8x128xf32>
    %18 = math.sin %17 : vector<8x128xf32>
    %19 = arith.mulf %14, %14 : vector<8x128xf32>
    %cst_12 = arith.constant 0.0174532924 : f32
    %20 = vector.broadcast %cst_12 : f32 to vector<8x128xf32>
    %21 = arith.mulf %4, %20 : vector<8x128xf32>
    %22 = math.cos %21 : vector<8x128xf32>
    %cst_13 = arith.constant 0.0174532924 : f32
    %23 = vector.broadcast %cst_13 : f32 to vector<8x128xf32>
    %24 = arith.mulf %8, %23 : vector<8x128xf32>
    %25 = math.cos %24 : vector<8x128xf32>
    %26 = arith.mulf %22, %25 : vector<8x128xf32>
    %27 = arith.mulf %18, %18 : vector<8x128xf32>
    %28 = arith.mulf %26, %27 : vector<8x128xf32>
    %29 = arith.addf %19, %28 : vector<8x128xf32>
    %cst_14 = arith.constant 0.000000e+00 : f32
    %cst_15 = arith.constant 1.000000e+00 : f32
    %30 = vector.broadcast %cst_14 : f32 to vector<8x128xf32>
    %31 = arith.maximumf %30, %29 : vector<8x128xf32>
    %32 = vector.broadcast %cst_15 : f32 to vector<8x128xf32>
    %33 = arith.minimumf %32, %31 : vector<8x128xf32>
    %34 = math.sqrt %33 : vector<8x128xf32>
    %cst_16 = arith.constant 1.000000e+00 : f32
    %35 = vector.broadcast %cst_16 : f32 to vector<8x128xf32>
    %36 = arith.subf %35, %33 : vector<8x128xf32>
    %37 = math.sqrt %36 : vector<8x128xf32>
    %38 = math.atan2 %34, %37 : vector<8x128xf32>
    %c0_17 = arith.constant 0 : index
    %c0_18 = arith.constant 0 : index
    %39 = vector.load %arg5[%c0_17, %c0_18] : memref<1x1xf32, #tpu.memory_space<vmem>>, vector<1x1xf32>
    %40 = vector.shape_cast %38 : vector<8x128xf32> to vector<1x8x128xf32>
    %cst_19 = arith.constant dense<0.000000e+00> : vector<1xf32>
    %41 = vector.multi_reduction <add>, %40, %cst_19 [1, 2] : vector<1x8x128xf32> to vector<1xf32>
    %42 = vector.shape_cast %41 : vector<1xf32> to vector<1x1x1xf32>
    %43 = vector.extract %42[0, 0, 0] : f32 from vector<1x1x1xf32>
    %44 = vector.broadcast %43 : f32 to vector<1x1xf32>
    %45 = arith.addf %39, %44 : vector<1x1xf32>
    %c0_20 = arith.constant 0 : index
    %c0_21 = arith.constant 0 : index
    %46 = vector.load %arg5[%c0_20, %c0_21] : memref<1x1xf32, #tpu.memory_space<vmem>>, vector<1x1xf32>
    tpu.vector_store %arg5[%c0_20, %c0_21], %45 {strides = array<i32>} : memref<1x1xf32, #tpu.memory_space<vmem>>, vector<1x1xf32>,
    %c0_i32_22 = arith.constant 0 : i32
    %47 = arith.cmpi eq, %arg1, %c0_i32_22 : i32
    %48 = arith.extui %47 : i1 to i32
    %c0_i32_23 = arith.constant 0 : i32
    %49 = arith.cmpi ne, %48, %c0_i32_23 : i32
    scf.if %49 {
      %c0_24 = arith.constant 0 : index
      %c0_25 = arith.constant 0 : index
      %50 = vector.load %arg5[%c0_24, %c0_25] : memref<1x1xf32, #tpu.memory_space<vmem>>, vector<1x1xf32>
      %51 = vector.shape_cast %50 : vector<1x1xf32> to vector<1x1xf32>
      %52 = vector.broadcast %51 : vector<1x1xf32> to vector<8x128xf32>
      %c0_26 = arith.constant 0 : index
      %c0_27 = arith.constant 0 : index
      %53 = vector.load %arg4[%c0_26, %c0_27] : memref<8x128xf32, #tpu.memory_space<vmem>>, vector<8x128xf32>
      tpu.vector_store %arg4[%c0_26, %c0_27], %52 {strides = array<i32>} : memref<8x128xf32, #tpu.memory_space<vmem>>, vector<8x128xf32>,
    } else {
    }
    return
  }
  func.func @transform_0(%arg0: i32, %arg1: i32) -> (i32, i32, i32) {
    %c1_i32 = arith.constant 1 : i32
    %0 = arith.muli %arg0, %c1_i32 : i32
    %1 = arith.addi %0, %arg1 : i32
    %c0_i32 = arith.constant 0 : i32
    %c0_i32_0 = arith.constant 0 : i32
    %c0_i32_1 = arith.constant 0 : i32
    return %c0_i32, %1, %c0_i32_0 : i32, i32, i32
  }
  func.func @transform_1(%arg0: i32, %arg1: i32) -> (i32, i32, i32) {
    %c1_i32 = arith.constant 1 : i32
    %0 = arith.muli %arg0, %c1_i32 : i32
    %1 = arith.addi %0, %arg1 : i32
    %c0_i32 = arith.constant 0 : i32
    %c0_i32_0 = arith.constant 0 : i32
    %c0_i32_1 = arith.constant 0 : i32
    return %c0_i32, %1, %c0_i32_0 : i32, i32, i32
  }
  func.func @transform_2(%arg0: i32, %arg1: i32) -> (i32, i32) {
    %c0_i32 = arith.constant 0 : i32
    %c0_i32_0 = arith.constant 0 : i32
    return %arg0, %c0_i32 : i32, i32
  }
}

</mosaic_0001>

<llo_original>
// kernel: tpu_custom_call.1
$region0: #{tpu_custom_call.1}
  #allocation0 [shape = 'u32[]', space=smem, size = 0x4, offset = 0x4, fixed_abs, tag = 'smem constant byte address 0x4 - core index']
  #allocation1 [shape = 'u32[72,128]{1,0:T(1,128)}', space=vmem, size = 0x9000, scoped, tag = 'internal scratch']
  #allocation2 [shape = 'f32[1,1]{1,0:T(1,128)}', space=vmem, size = 0x200, scoped, tag = 'scratch operand']
  %s0 = inlined_call_operand.hbm [shape: f32[2,16,128], index: 0, kind: input, shape index: {}]
  %s1 = inlined_call_operand.hbm [shape: f32[2,16,128], index: 1, kind: input, shape index: {}]
  %s2 = inlined_call_operand.hbm [shape: f32[16,128], index: 2, kind: output, shape index: {}]
  %s3 = sld [smem:[#allocation0]]
  $region57: #{tpu_custom_call.1} parent=0
    _
  %s5 = ssub.s32 1, %s3
  %s6 = scalar_select 0, %s5, %s3
  $region1: #{tpu_custom_call.1} parent=0
    #allocation3 [shape = 'u8[16384]{0}', space=vmem, size = 0x4000, scoped, tag = 'input window, operand 0']
    #allocation4 [shape = 's32[2]{0}', space=sflag, size = 0x8, scoped, tag = 'scoped memory for tpu_custom_call.1']
    #allocation5 [shape = 's32[2]{0}', space=sflag, size = 0x8, scoped, tag = 'scoped memory for tpu_custom_call.1']
    #allocation6 [shape = 'u8[16384]{0}', space=vmem, size = 0x4000, scoped, tag = 'input window, operand 1']
    #allocation7 [shape = 's32[2]{0}', space=sflag, size = 0x8, scoped, tag = 'scoped memory for tpu_custom_call.1']
    #allocation8 [shape = 'u8[8192]{0}', space=vmem, size = 0x2000, scoped, tag = 'output window, operand 0']
    %7 = vsyncpa [#allocation4], 0
    %s8 = scalar_lea.sflag [#allocation4], 1
    %9 = vsyncpa %s8, 0
    %10 = vsyncpa [#allocation7], 0
    %s11 = scalar_lea.sflag [#allocation7], 1
    %12 = vsyncpa %s11, 0
    %13 = vsyncpa [#allocation5], 0
    %s14 = scalar_lea.sflag [#allocation5], 1
    %15 = vsyncpa %s14, 0
    loop: start=0, step=1, limit=4
    $region2: #{tpu_custom_call.1} parent=1 // loop_pre_header
      _
    $region3: #{tpu_custom_call.1} parent=1 // loop_header
      %s17 = sphi 0, %s21
      %p18 = scmp.ge.s32.totalorder %s17, 4
      %s24 = sphi 0, %s36
      %s25 = sphi 0, %s32
      %s26 = sphi 0, %s24
      %s27 = sphi 0, %s25
      %s28 = sphi 0, %s26
      %s29 = sphi 0, %s27
      %s41 = sphi 0, %s43
      %s44 = sphi 0, %s41
      %s45 = sphi 0, %s44
      %s61 = sphi 0, %s45
      %s69 = sphi 0, %s71
      %s72 = sphi 0, %s69
      %s73 = sphi 0, %s72
      %s89 = sphi 0, %s73
      %s95 = sphi 0, %s97
      %s98 = sphi 0, %s95
      %s99 = sphi 0, %s98
      %s115 = sphi 0, %s99
    $region4: #{tpu_custom_call.1} parent=1 // loop_header_branch
      %20 = sbr.rel (%p18) target = $region8
    $region5: #{tpu_custom_call.1} parent=1 // loop_body
      %s22 = ssub.s32 %s17, 1
      %s23 = ssub.s32 %s17, 2
      %s30 = sadd.s32 1, %s25
      %p31 = scmp.ge.s32.totalorder %s30, 1
      %s32 = scalar_select %p31, 0, %s30
      %s33 = sadd.s32 1, %s24
      %s34 = scalar_select %p31, %s33, %s24
      %p35 = scmp.ge.s32.totalorder %s34, 2
      %s36 = scalar_select %p35, 0, %s34
      %s37 = sadd.s32 %s24, %s25
      %s38 = sadd.s32 %s36, %s32
      %s39 = ssub.s32 %s37, %s38
      %p40 = scmp.eq.s32.totalorder %s39, 0
      %s42 = sadd.s32 %s41, 1
      %s43 = scalar_select %p40, %s41, %s42
      %p46 = pneg %p40
      %p47 = scmp.eq.s32.totalorder %s17, 1
      %p48 = por %p46, %p47
      %p49 = scmp.ne.s32.totalorder %s41, %s44
      %p50 = scmp.eq.s32.totalorder %s17, 0
      %p51 = por %p49, %p50
      %p52 = scmp.ne.s32.totalorder %s41, %s44
      %p53 = scmp.eq.s32.totalorder %s22, 1
      %p54 = por %p52, %p53
      %p55 = scmp.ne.s32.totalorder %s44, %s45
      %p56 = scmp.eq.s32.totalorder %s22, 0
      %p57 = por %p55, %p56
      %p58 = scmp.ne.s32.totalorder %s44, %s45
      %p59 = scmp.eq.s32.totalorder %s23, 1
      %p60 = por %p58, %p59
      %p62 = scmp.ne.s32.totalorder %s45, %s61
      %p63 = scmp.eq.s32.totalorder %s23, 0
      %p64 = por %p62, %p63
      %s65 = sadd.s32 %s24, %s25
      %s66 = sadd.s32 %s36, %s32
      %s67 = ssub.s32 %s65, %s66
      %p68 = scmp.eq.s32.totalorder %s67, 0
      %s70 = sadd.s32 %s69, 1
      %s71 = scalar_select %p68, %s69, %s70
      %p74 = pneg %p68
      %p75 = scmp.eq.s32.totalorder %s17, 1
      %p76 = por %p74, %p75
      %p77 = scmp.ne.s32.totalorder %s69, %s72
      %p78 = scmp.eq.s32.totalorder %s17, 0
      %p79 = por %p77, %p78
      %p80 = scmp.ne.s32.totalorder %s69, %s72
      %p81 = scmp.eq.s32.totalorder %s22, 1
      %p82 = por %p80, %p81
      %p83 = scmp.ne.s32.totalorder %s72, %s73
      %p84 = scmp.eq.s32.totalorder %s22, 0
      %p85 = por %p83, %p84
      %p86 = scmp.ne.s32.totalorder %s72, %s73
      %p87 = scmp.eq.s32.totalorder %s23, 1
      %p88 = por %p86, %p87
      %p90 = scmp.ne.s32.totalorder %s73, %s89
      %p91 = scmp.eq.s32.totalorder %s23, 0
      %p92 = por %p90, %p91
      %s93 = ssub.s32 %s24, %s36
      %p94 = scmp.eq.s32.totalorder %s93, 0
      %s96 = sadd.s32 %s95, 1
      %s97 = scalar_select %p94, %s95, %s96
      %p100 = pneg %p94
      %p101 = scmp.eq.s32.totalorder %s17, 1
      %p102 = por %p100, %p101
      %p103 = scmp.ne.s32.totalorder %s95, %s98
      %p104 = scmp.eq.s32.totalorder %s17, 0
      %p105 = por %p103, %p104
      %p106 = scmp.ne.s32.totalorder %s95, %s98
      %p107 = scmp.eq.s32.totalorder %s22, 1
      %p108 = por %p106, %p107
      %p109 = scmp.ne.s32.totalorder %s98, %s99
      %p110 = scmp.eq.s32.totalorder %s22, 0
      %p111 = por %p109, %p110
      %p112 = scmp.ne.s32.totalorder %s98, %s99
      %p113 = scmp.eq.s32.totalorder %s23, 1
      %p114 = por %p112, %p113
      %p116 = scmp.ne.s32.totalorder %s99, %s115
      %p117 = scmp.eq.s32.totalorder %s23, 0
      %p118 = por %p116, %p117
      %p119 = scmp.le.s32.totalorder 1, %s17
      %p120 = scmp.lt.s32.totalorder %s17, 3
      %p121 = pnand %p119, %p120
      %p122 = pneg %p121
      // Predicated region
      $region9: #{tpu_custom_call.1} parent=5 // pred_check
        _
      $region10: #{tpu_custom_call.1} parent=5 // pred_check_branch
        %124 = sbr.rel (%p121) target = $region12
      $region11: #{tpu_custom_call.1} parent=5 // pred_region
        %s125 = ssub.s32 %s17, 1
      $region12: #{tpu_custom_call.1} parent=5 // pred_fallthru
        _
      %p126 = scmp.lt.s32.totalorder %s17, 2
      // Predicated region
      $region13: #{tpu_custom_call.1} parent=5 // pred_check
        %p127 = pneg %p126
      $region14: #{tpu_custom_call.1} parent=5 // pred_check_branch
        %129 = sbr.rel (%p127) target = $region16
      $region15: #{tpu_custom_call.1} parent=5 // pred_region
        // Predicated region
        $region17: #{tpu_custom_call.1} parent=15 // pred_check
          %p130 = pneg %p51
        $region18: #{tpu_custom_call.1} parent=15 // pred_check_branch
          %132 = sbr.rel (%p130) target = $region20
        $region19: #{tpu_custom_call.1} parent=15 // pred_region
          %s133 = sand.u32 %s41, 1
          %s134 = scalar_lea.sflag [#allocation4], %s133
          %s135 = sand.u32 %s41, 1
          %s136 = smul.addr %s135, 16
          %s137 = scalar_lea.vmem [#allocation3], %s136
          %s138 = sadd.s32 %s24, %s25
          %140 = vsyncadd %s134, 0
          %s141 = smul.addr %s138, 8
          %s142 = scalar_lea.hbm %s0, %s141
          %s143 = sshll.u32 %s142, 4
          %s144 = int_to_ptr.hbm [resolvable:$true] %s143
          %s145 = sshll.u32 %s137, 4
          %s146 = int_to_ptr.vmem [resolvable:$true] %s145
          %151 = dma.hbm_to_vmem [thread:$0]  %s144, 256, %s146, %s134, 256, 128, 8
        $region20: #{tpu_custom_call.1} parent=15 // pred_fallthru
          _
        // Predicated region
        $region21: #{tpu_custom_call.1} parent=15 // pred_check
          %p152 = pneg %p79
        $region22: #{tpu_custom_call.1} parent=15 // pred_check_branch
          %154 = sbr.rel (%p152) target = $region24
        $region23: #{tpu_custom_call.1} parent=15 // pred_region
          %s155 = sand.u32 %s69, 1
          %s156 = scalar_lea.sflag [#allocation7], %s155
          %s157 = sand.u32 %s69, 1
          %s158 = smul.addr %s157, 16
          %s159 = scalar_lea.vmem [#allocation6], %s158
          %s160 = sadd.s32 %s24, %s25
          %162 = vsyncadd %s156, 0
          %s163 = smul.addr %s160, 8
          %s164 = scalar_lea.hbm %s1, %s163
          %s165 = sshll.u32 %s164, 4
          %s166 = int_to_ptr.hbm [resolvable:$true] %s165
          %s167 = sshll.u32 %s159, 4
          %s168 = int_to_ptr.vmem [resolvable:$true] %s167
          %173 = dma.hbm_to_vmem [thread:$0]  %s166, 256, %s168, %s156, 256, 128, 8
        $region24: #{tpu_custom_call.1} parent=15 // pred_fallthru
          _
      $region16: #{tpu_custom_call.1} parent=5 // pred_fallthru
        _
      %p174 = scmp.le.s32.totalorder 1, %s17
      %p175 = scmp.lt.s32.totalorder %s17, 3
      %p176 = pnand %p174, %p175
      %p177 = pneg %p176
      // Predicated region
      $region25: #{tpu_custom_call.1} parent=5 // pred_check
        _
      $region26: #{tpu_custom_call.1} parent=5 // pred_check_branch
        %179 = sbr.rel (%p176) target = $region28
      $region27: #{tpu_custom_call.1} parent=5 // pred_region
        %s180 = ssub.s32 %s17, 1
        %s181 = sand.u32 %s44, 1
        %s182 = scalar_lea.sflag [#allocation4], %s181
        %s183 = sand.u32 %s44, 1
        %s184 = smul.addr %s183, 16
        %s185 = scalar_lea.vmem [#allocation3], %s184
        // Predicated region
        $region29: #{tpu_custom_call.1} parent=27 // pred_check
          %p186 = pneg %p57
        $region30: #{tpu_custom_call.1} parent=27 // pred_check_branch
          %188 = sbr.rel (%p186) target = $region32
        $region31: #{tpu_custom_call.1} parent=27 // pred_region
          %190 = dma.done %s182, 256
        $region32: #{tpu_custom_call.1} parent=27 // pred_fallthru
          _
        %s191 = sand.u32 %s72, 1
        %s192 = scalar_lea.sflag [#allocation7], %s191
        %s193 = sand.u32 %s72, 1
        %s194 = smul.addr %s193, 16
        %s195 = scalar_lea.vmem [#allocation6], %s194
        // Predicated region
        $region33: #{tpu_custom_call.1} parent=27 // pred_check
          %p196 = pneg %p85
        $region34: #{tpu_custom_call.1} parent=27 // pred_check_branch
          %198 = sbr.rel (%p196) target = $region36
        $region35: #{tpu_custom_call.1} parent=27 // pred_region
          %200 = dma.done %s192, 256
        $region36: #{tpu_custom_call.1} parent=27 // pred_fallthru
          _
        %s201 = sand.u32 %s44, 1
        %s202 = scalar_lea.sflag [#allocation4], %s201
        %s203 = sand.u32 %s44, 1
        %s204 = smul.addr %s203, 16
        %s205 = scalar_lea.vmem [#allocation3], %s204
        %p206 = pneg %p57
        %p207 = pneg %p54
        %s208 = sand.u32 %s72, 1
        %s209 = scalar_lea.sflag [#allocation7], %s208
        %s210 = sand.u32 %s72, 1
        %s211 = smul.addr %s210, 16
        %s212 = scalar_lea.vmem [#allocation6], %s211
        %p213 = pneg %p85
        %p214 = pneg %p82
        %p215 = pneg %p111
        %p216 = pneg %p108
        %s217 = sand.u32 %s98, 1
        %s218 = scalar_lea.sflag [#allocation5], %s217
        %s219 = sand.u32 %s98, 1
        %s220 = smul.addr %s219, 8
        %s221 = scalar_lea.vmem [#allocation8], %s220
        %s222 = sadd.s32 %s26, %s27
        %s223 = sadd.s32 %s26, %s27
        %p224 = scmp.eq.s32.totalorder %s27, 0
        // Predicated region
        $region37: #{tpu_custom_call.1} parent=27 // pred_check
          %p225 = pneg %p224
        $region38: #{tpu_custom_call.1} parent=27 // pred_check_branch
          %227 = sbr.rel (%p225) target = $region40
        $region39: #{tpu_custom_call.1} parent=27 // pred_region
          %vm228 = vcmask 0
          %229 = vst.msk [vmem:[#allocation2] sm:$0x1] %vm228, 0.0
        $region40: #{tpu_custom_call.1} parent=27 // pred_fallthru
          _
        %v230 = vld [vmem:[%s185] sm:$0xff]
        %s231 = scalar_lea.vmem %s185, 8 [#allocation3]
        %v232 = vld [vmem:[%s231] sm:$0xff]
        %v233 = vld [vmem:[%s195] sm:$0xff]
        %s234 = scalar_lea.vmem %s195, 8 [#allocation6]
        %v235 = vld [vmem:[%s234] sm:$0xff]
        %v236 = vsub.f32 %v233, %v230
        %v237 = vmul.f32 %v236, 0.008726646
        %v238 = vand.u32 2147483647, %v237
        %vm239 = vcmp.le.f32.partialorder %v238, 0.7853982
        %vm240 = vcmp.lt.s32.totalorder %v237, 0
        %v241 = vand.u32 %v237, 2139095040
        %v242 = vshrl.u32 %v241, 23
        %v243 = vsub.s32 %v242, 127
        %v244 = vand.u32 2147483647, %v237
        %v245 = vand.u32 %v244, 8388607
        %v246 = vor.u32 %v245, 8388608
        %v247 = vsub.s32 0, %v246
        %v248 = vadd.s32 %v243, 1
        %vm249 = vcmp.gt.s32.totalorder %v248, 0
        %v250 = vsel %vm249, %v248, 0
        %v251 = vshrl.u32 %v250, 5
        %v252 = vand.u32 %v250, 31
        %v253 = vsub.s32 32, %v252
        %v254 = vshrl.u32 683565275, %v253
        %v255 = vshll.u32 683565275, %v252
        %v256 = vshrl.u32 2475754826, %v253
        %v257 = vor.u32 %v255, %v256
        %v258 = vshll.u32 2475754826, %v252
        %v259 = vshrl.u32 2131351028, %v253
        %v260 = vor.u32 %v258, %v259
        %v261 = vshll.u32 2131351028, %v252
        %v262 = vshrl.u32 2102212464, %v253
        %v263 = vor.u32 %v261, %v262
        %v264 = vshll.u32 2102212464, %v252
        %v265 = vshrl.u32 920167782, %v253
        %v266 = vor.u32 %v264, %v265
        %v267 = vshll.u32 920167782, %v252
        %v268 = vshrl.u32 1326507024, %v253
        %v269 = vor.u32 %v267, %v268
        %vm270 = vcmp.lt.s32.totalorder %v251, 1
        %vm271 = vcmp.lt.s32.totalorder %v251, 2
        %vm272 = vcmp.lt.s32.totalorder %v251, 3
        %vm273 = vcmp.lt.s32.totalorder %v251, 4
        %v274 = vsel %vm270, %v254, %v257
        %v275 = vsel %vm273, %v263, 2102212464
        %v276 = vsel %vm272, %v260, %v275
        %v277 = vsel %vm271, %v274, %v276
        %v278 = vsel %vm270, %v257, %v260
        %v279 = vsel %vm273, %v266, 920167782
        %v280 = vsel %vm272, %v263, %v279
        %v281 = vsel %vm271, %v278, %v280
        %v282 = vsel %vm270, %v260, %v263
        %v283 = vsel %vm273, %v269, 1326507024
        %v284 = vsel %vm272, %v266, %v283
        %v285 = vsel %vm271, %v282, %v284
        %v286 = vshll.u32 %v246, 8
        %v287 = vand.u32 %v286, 65535
        %v288 = vshrl.u32 %v286, 16
        %v289 = vand.u32 %v285, 65535
        %v290 = vshrl.u32 %v285, 16
        %v291 = vmul.u32 %v287, %v289
        %v292 = vmul.u32 %v287, %v290
        %v293 = vmul.u32 %v288, %v289
        %v294 = vmul.u32 %v288, %v290
        %v295 = vshll.u32 %v292, 16
        %v296 = vshrl.u32 %v292, 16
        %v297 = vshll.u32 %v293, 16
        %v298 = vshrl.u32 %v293, 16
        %vm299 = vc.u32 %v291, %v295
        %v300 = vsel %vm299, 1, 0
        %v301 = vadd.s32 %v291, %v295
        %v302 = vadd.s32 %v294, %v300
        %vm303 = vc.u32 %v301, %v297
        %v304 = vsel %vm303, 1, 0
        %v305 = vadd.s32 %v301, %v297
        %v306 = vadd.s32 %v302, %v304
        %v307 = vadd.s32 %v306, %v296
        %v308 = vadd.s32 %v307, %v298
        %v309 = vand.u32 %v286, 65535
        %v310 = vshrl.u32 %v286, 16
        %v311 = vand.u32 %v281, 65535
        %v312 = vshrl.u32 %v281, 16
        %v313 = vmul.u32 %v309, %v311
        %v314 = vmul.u32 %v309, %v312
        %v315 = vmul.u32 %v310, %v311
        %v316 = vmul.u32 %v310, %v312
        %v317 = vshll.u32 %v314, 16
        %v318 = vshrl.u32 %v314, 16
        %v319 = vshll.u32 %v315, 16
        %v320 = vshrl.u32 %v315, 16
        %vm321 = vc.u32 %v313, %v317
        %v322 = vsel %vm321, 1, 0
        %v323 = vadd.s32 %v313, %v317
        %v324 = vadd.s32 %v316, %v322
        %vm325 = vc.u32 %v323, %v319
        %v326 = vsel %vm325, 1, 0
        %v327 = vadd.s32 %v323, %v319
        %v328 = vadd.s32 %v324, %v326
        %v329 = vadd.s32 %v328, %v318
        %v330 = vadd.s32 %v329, %v320
        %v331 = vmul.u32 %v286, %v277
        %v332 = vadd.s32 %v308, %v327
        %vm333 = vc.u32 %v308, %v327
        %v334 = vadd.s32 %v330, 1
        %v335 = vsel %vm333, %v334, %v330
        %v336 = vadd.s32 %v331, %v335
        %v337 = vadd.s32 %v336, 536870912
        %v338 = vshrl.u32 %v337, 30
        %v339 = vshll.u32 %v338, 30
        %v340 = vsub.s32 %v336, %v339
        %vm341 = vcmp.lt.s32.totalorder %v340, 0
        %v342 = vsub.s32 0, %v340
        %v343 = vsel %vm341, %v342, %v340
        %v344 = vclz %v343
        %v345 = vsub.s32 %v344, 2
        %vm346 = vcmp.gt.s32.totalorder 0, %v345
        %v347 = vsel %vm346, 0, %v345
        %v348 = vsub.s32 32, %v347
        %v349 = vshll.u32 %v340, %v347
        %v350 = vshrl.u32 %v332, %v348
        %v351 = vor.u32 %v349, %v350
        %v352 = vsub.s32 4294967266, %v347
        %v353 = vadd.s32 %v352, 127
        %v354 = vshll.u32 %v353, 23
        %v355 = vor.u32 4788187, %v354
        %v356 = vand.u32 2147483647, %v355
        %v358 = vcvt.s32.f32 %v351
        %v359 = vmul.f32 %v358, %v356
        %v360 = vxor.u32 %v359, 2147483648
        %v361 = vsel %vm240, %v360, %v359
        %v362 = vsub.s32 4, %v338
        %v363 = vsel %vm240, %v362, %v338
        %v364 = vsel %vm239, %v237, %v361
        %v365 = vsel %vm239, 0, %v363
        %v366 = vmul.f32 %v364, %v364
        %v367 = vmul.f32 %v366, -0.001358992
        %v368 = vadd.f32 %v367, 0.041655596
        %v369 = vmul.f32 %v366, %v368
        %v370 = vadd.f32 %v369, -0.4999988
        %v371 = vmul.f32 %v366, %v370
        %v372 = vadd.f32 1.0, %v371
        %v373 = vmul.f32 %v364, %v364
        %v374 = vmul.f32 %v373, -0.00019511016
        %v375 = vadd.f32 %v374, 0.008332121
        %v376 = vmul.f32 %v373, %v375
        %v377 = vadd.f32 %v376, -0.16666654
        %v378 = vmul.f32 %v373, %v377
        %v379 = vadd.f32 %v378, 1.0
        %v380 = vmul.f32 %v379, %v364
        %vm381 = vweird.f32 %v237
        %v382 = vadd.s32 %v365, 3
        %v383 = vand.u32 %v382, 3
        %vm384 = vcmp.lt.s32.totalorder %v383, 2
        %vm385 = vcmp.eq.s32.totalorder %v383, 0
        %v386 = vxor.u32 %v380, 2147483648
        %v387 = vsel %vm385, %v372, %v386
        %vm388 = vcmp.eq.s32.totalorder %v383, 2
        %v389 = vxor.u32 %v372, 2147483648
        %v390 = vsel %vm388, %v389, %v380
        %v391 = vsel %vm384, %v387, %v390
        %v392 = vsel %vm381, nan, %v391
        %v393 = vsub.f32 %v235, %v232
        %v394 = vmul.f32 %v393, 0.008726646
        %v395 = vand.u32 2147483647, %v394
        %vm396 = vcmp.le.f32.partialorder %v395, 0.7853982
        %vm397 = vcmp.lt.s32.totalorder %v394, 0
        %v398 = vand.u32 %v394, 2139095040
        %v399 = vshrl.u32 %v398, 23
        %v400 = vsub.s32 %v399, 127
        %v401 = vand.u32 2147483647, %v394
        %v402 = vand.u32 %v401, 8388607
        %v403 = vor.u32 %v402, 8388608
        %v404 = vsub.s32 0, %v403
        %v405 = vadd.s32 %v400, 1
        %vm406 = vcmp.gt.s32.totalorder %v405, 0
        %v407 = vsel %vm406, %v405, 0
        %v408 = vshrl.u32 %v407, 5
        %v409 = vand.u32 %v407, 31
        %v410 = vsub.s32 32, %v409
        %v411 = vshrl.u32 683565275, %v410
        %v412 = vshll.u32 683565275, %v409
        %v413 = vshrl.u32 2475754826, %v410
        %v414 = vor.u32 %v412, %v413
        %v415 = vshll.u32 2475754826, %v409
        %v416 = vshrl.u32 2131351028, %v410
        %v417 = vor.u32 %v415, %v416
        %v418 = vshll.u32 2131351028, %v409
        %v419 = vshrl.u32 2102212464, %v410
        %v420 = vor.u32 %v418, %v419
        %v421 = vshll.u32 2102212464, %v409
        %v422 = vshrl.u32 920167782, %v410
        %v423 = vor.u32 %v421, %v422
        %v424 = vshll.u32 920167782, %v409
        %v425 = vshrl.u32 1326507024, %v410
        %v426 = vor.u32 %v424, %v425
        %vm427 = vcmp.lt.s32.totalorder %v408, 1
        %vm428 = vcmp.lt.s32.totalorder %v408, 2
        %vm429 = vcmp.lt.s32.totalorder %v408, 3
        %vm430 = vcmp.lt.s32.totalorder %v408, 4
        %v431 = vsel %vm427, %v411, %v414
        %v432 = vsel %vm430, %v420, 2102212464
        %v433 = vsel %vm429, %v417, %v432
        %v434 = vsel %vm428, %v431, %v433
        %v435 = vsel %vm427, %v414, %v417
        %v436 = vsel %vm430, %v423, 920167782
        %v437 = vsel %vm429, %v420, %v436
        %v438 = vsel %vm428, %v435, %v437
        %v439 = vsel %vm427, %v417, %v420
        %v440 = vsel %vm430, %v426, 1326507024
        %v441 = vsel %vm429, %v423, %v440
        %v442 = vsel %vm428, %v439, %v441
        %v443 = vshll.u32 %v403, 8
        %v444 = vand.u32 %v443, 65535
        %v445 = vshrl.u32 %v443, 16
        %v446 = vand.u32 %v442, 65535
        %v447 = vshrl.u32 %v442, 16
        %v448 = vmul.u32 %v444, %v446
        %v449 = vmul.u32 %v444, %v447
        %v450 = vmul.u32 %v445, %v446
        %v451 = vmul.u32 %v445, %v447
        %v452 = vshll.u32 %v449, 16
        %v453 = vshrl.u32 %v449, 16
        %v454 = vshll.u32 %v450, 16
        %v455 = vshrl.u32 %v450, 16
        %vm456 = vc.u32 %v448, %v452
        %v457 = vsel %vm456, 1, 0
        %v458 = vadd.s32 %v448, %v452
        %v459 = vadd.s32 %v451, %v457
        %vm460 = vc.u32 %v458, %v454
        %v461 = vsel %vm460, 1, 0
        %v462 = vadd.s32 %v458, %v454
        %v463 = vadd.s32 %v459, %v461
        %v464 = vadd.s32 %v463, %v453
        %v465 = vadd.s32 %v464, %v455
        %v466 = vand.u32 %v443, 65535
        %v467 = vshrl.u32 %v443, 16
        %v468 = vand.u32 %v438, 65535
        %v469 = vshrl.u32 %v438, 16
        %v470 = vmul.u32 %v466, %v468
        %v471 = vmul.u32 %v466, %v469
        %v472 = vmul.u32 %v467, %v468
        %v473 = vmul.u32 %v467, %v469
        %v474 = vshll.u32 %v471, 16
        %v475 = vshrl.u32 %v471, 16
        %v476 = vshll.u32 %v472, 16
        %v477 = vshrl.u32 %v472, 16
        %vm478 = vc.u32 %v470, %v474
        %v479 = vsel %vm478, 1, 0
        %v480 = vadd.s32 %v470, %v474
        %v481 = vadd.s32 %v473, %v479
        %vm482 = vc.u32 %v480, %v476
        %v483 = vsel %vm482, 1, 0
        %v484 = vadd.s32 %v480, %v476
        %v485 = vadd.s32 %v481, %v483
        %v486 = vadd.s32 %v485, %v475
        %v487 = vadd.s32 %v486, %v477
        %v488 = vmul.u32 %v443, %v434
        %v489 = vadd.s32 %v465, %v484
        %vm490 = vc.u32 %v465, %v484
        %v491 = vadd.s32 %v487, 1
        %v492 = vsel %vm490, %v491, %v487
        %v493 = vadd.s32 %v488, %v492
        %v494 = vadd.s32 %v493, 536870912
        %v495 = vshrl.u32 %v494, 30
        %v496 = vshll.u32 %v495, 30
        %v497 = vsub.s32 %v493, %v496
        %vm498 = vcmp.lt.s32.totalorder %v497, 0
        %v499 = vsub.s32 0, %v497
        %v500 = vsel %vm498, %v499, %v497
        %v501 = vclz %v500
        %v502 = vsub.s32 %v501, 2
        %vm503 = vcmp.gt.s32.totalorder 0, %v502
        %v504 = vsel %vm503, 0, %v502
        %v505 = vsub.s32 32, %v504
        %v506 = vshll.u32 %v497, %v504
        %v507 = vshrl.u32 %v489, %v505
        %v508 = vor.u32 %v506, %v507
        %v509 = vsub.s32 4294967266, %v504
        %v510 = vadd.s32 %v509, 127
        %v511 = vshll.u32 %v510, 23
        %v512 = vor.u32 4788187, %v511
        %v513 = vand.u32 2147483647, %v512
        %v515 = vcvt.s32.f32 %v508
        %v516 = vmul.f32 %v515, %v513
        %v517 = vxor.u32 %v516, 2147483648
        %v518 = vsel %vm397, %v517, %v516
        %v519 = vsub.s32 4, %v495
        %v520 = vsel %vm397, %v519, %v495
        %v521 = vsel %vm396, %v394, %v518
        %v522 = vsel %vm396, 0, %v520
        %v523 = vmul.f32 %v521, %v521
        %v524 = vmul.f32 %v523, -0.001358992
        %v525 = vadd.f32 %v524, 0.041655596
        %v526 = vmul.f32 %v523, %v525
        %v527 = vadd.f32 %v526, -0.4999988
        %v528 = vmul.f32 %v523, %v527
        %v529 = vadd.f32 1.0, %v528
        %v530 = vmul.f32 %v521, %v521
        %v531 = vmul.f32 %v530, -0.00019511016
        %v532 = vadd.f32 %v531, 0.008332121
        %v533 = vmul.f32 %v530, %v532
        %v534 = vadd.f32 %v533, -0.16666654
        %v535 = vmul.f32 %v530, %v534
        %v536 = vadd.f32 %v535, 1.0
        %v537 = vmul.f32 %v536, %v521
        %vm538 = vweird.f32 %v394
        %v539 = vadd.s32 %v522, 3
        %v540 = vand.u32 %v539, 3
        %vm541 = vcmp.lt.s32.totalorder %v540, 2
        %vm542 = vcmp.eq.s32.totalorder %v540, 0
        %v543 = vxor.u32 %v537, 2147483648
        %v544 = vsel %vm542, %v529, %v543
        %vm545 = vcmp.eq.s32.totalorder %v540, 2
        %v546 = vxor.u32 %v529, 2147483648
        %v547 = vsel %vm545, %v546, %v537
        %v548 = vsel %vm541, %v544, %v547
        %v549 = vsel %vm538, nan, %v548
        %v550 = vmul.f32 %v392, %v392
        %v551 = vmul.f32 %v230, 0.017453292
        %v552 = vand.u32 2147483647, %v551
        %vm553 = vcmp.le.f32.partialorder %v552, 0.7853982
        %vm554 = vcmp.lt.s32.totalorder %v551, 0
        %v555 = vand.u32 %v551, 2139095040
        %v556 = vshrl.u32 %v555, 23
        %v557 = vsub.s32 %v556, 127
        %v558 = vand.u32 2147483647, %v551
        %v559 = vand.u32 %v558, 8388607
        %v560 = vor.u32 %v559, 8388608
        %v561 = vsub.s32 0, %v560
        %v562 = vadd.s32 %v557, 1
        %vm563 = vcmp.gt.s32.totalorder %v562, 0
        %v564 = vsel %vm563, %v562, 0
        %v565 = vshrl.u32 %v564, 5
        %v566 = vand.u32 %v564, 31
        %v567 = vsub.s32 32, %v566
        %v568 = vshrl.u32 683565275, %v567
        %v569 = vshll.u32 683565275, %v566
        %v570 = vshrl.u32 2475754826, %v567
        %v571 = vor.u32 %v569, %v570
        %v572 = vshll.u32 2475754826, %v566
        %v573 = vshrl.u32 2131351028, %v567
        %v574 = vor.u32 %v572, %v573
        %v575 = vshll.u32 2131351028, %v566
        %v576 = vshrl.u32 2102212464, %v567
        %v577 = vor.u32 %v575, %v576
        %v578 = vshll.u32 2102212464, %v566
        %v579 = vshrl.u32 920167782, %v567
        %v580 = vor.u32 %v578, %v579
        %v581 = vshll.u32 920167782, %v566
        %v582 = vshrl.u32 1326507024, %v567
        %v583 = vor.u32 %v581, %v582
        %vm584 = vcmp.lt.s32.totalorder %v565, 1
        %vm585 = vcmp.lt.s32.totalorder %v565, 2
        %vm586 = vcmp.lt.s32.totalorder %v565, 3
        %vm587 = vcmp.lt.s32.totalorder %v565, 4
        %v588 = vsel %vm584, %v568, %v571
        %v589 = vsel %vm587, %v577, 2102212464
        %v590 = vsel %vm586, %v574, %v589
        %v591 = vsel %vm585, %v588, %v590
        %v592 = vsel %vm584, %v571, %v574
        %v593 = vsel %vm587, %v580, 920167782
        %v594 = vsel %vm586, %v577, %v593
        %v595 = vsel %vm585, %v592, %v594
        %v596 = vsel %vm584, %v574, %v577
        %v597 = vsel %vm587, %v583, 1326507024
        %v598 = vsel %vm586, %v580, %v597
        %v599 = vsel %vm585, %v596, %v598
        %v600 = vshll.u32 %v560, 8
        %v601 = vand.u32 %v600, 65535
        %v602 = vshrl.u32 %v600, 16
        %v603 = vand.u32 %v599, 65535
        %v604 = vshrl.u32 %v599, 16
        %v605 = vmul.u32 %v601, %v603
        %v606 = vmul.u32 %v601, %v604
        %v607 = vmul.u32 %v602, %v603
        %v608 = vmul.u32 %v602, %v604
        %v609 = vshll.u32 %v606, 16
        %v610 = vshrl.u32 %v606, 16
        %v611 = vshll.u32 %v607, 16
        %v612 = vshrl.u32 %v607, 16
        %vm613 = vc.u32 %v605, %v609
        %v614 = vsel %vm613, 1, 0
        %v615 = vadd.s32 %v605, %v609
        %v616 = vadd.s32 %v608, %v614
        %vm617 = vc.u32 %v615, %v611
        %v618 = vsel %vm617, 1, 0
        %v619 = vadd.s32 %v615, %v611
        %v620 = vadd.s32 %v616, %v618
        %v621 = vadd.s32 %v620, %v610
        %v622 = vadd.s32 %v621, %v612
        %v623 = vand.u32 %v600, 65535
        %v624 = vshrl.u32 %v600, 16
        %v625 = vand.u32 %v595, 65535
        %v626 = vshrl.u32 %v595, 16
        %v627 = vmul.u32 %v623, %v625
        %v628 = vmul.u32 %v623, %v626
        %v629 = vmul.u32 %v624, %v625
        %v630 = vmul.u32 %v624, %v626
        %v631 = vshll.u32 %v628, 16
        %v632 = vshrl.u32 %v628, 16
        %v633 = vshll.u32 %v629, 16
        %v634 = vshrl.u32 %v629, 16
        %vm635 = vc.u32 %v627, %v631
        %v636 = vsel %vm635, 1, 0
        %v637 = vadd.s32 %v627, %v631
        %v638 = vadd.s32 %v630, %v636
        %vm639 = vc.u32 %v637, %v633
        %v640 = vsel %vm639, 1, 0
        %v641 = vadd.s32 %v637, %v633
        %v642 = vadd.s32 %v638, %v640
        %v643 = vadd.s32 %v642, %v632
        %v644 = vadd.s32 %v643, %v634
        %v645 = vmul.u32 %v600, %v591
        %v646 = vadd.s32 %v622, %v641
        %vm647 = vc.u32 %v622, %v641
        %v648 = vadd.s32 %v644, 1
        %v649 = vsel %vm647, %v648, %v644
        %v650 = vadd.s32 %v645, %v649
        %v651 = vadd.s32 %v650, 536870912
        %v652 = vshrl.u32 %v651, 30
        %v653 = vshll.u32 %v652, 30
        %v654 = vsub.s32 %v650, %v653
        %vm655 = vcmp.lt.s32.totalorder %v654, 0
        %v656 = vsub.s32 0, %v654
        %v657 = vsel %vm655, %v656, %v654
        %v658 = vclz %v657
        %v659 = vsub.s32 %v658, 2
        %vm660 = vcmp.gt.s32.totalorder 0, %v659
        %v661 = vsel %vm660, 0, %v659
        %v662 = vsub.s32 32, %v661
        %v663 = vshll.u32 %v654, %v661
        %v664 = vshrl.u32 %v646, %v662
        %v665 = vor.u32 %v663, %v664
        %v666 = vsub.s32 4294967266, %v661
        %v667 = vadd.s32 %v666, 127
        %v668 = vshll.u32 %v667, 23
        %v669 = vor.u32 4788187, %v668
        %v670 = vand.u32 2147483647, %v669
        %v672 = vcvt.s32.f32 %v665
        %v673 = vmul.f32 %v672, %v670
        %v674 = vxor.u32 %v673, 2147483648
        %v675 = vsel %vm554, %v674, %v673
        %v676 = vsub.s32 4, %v652
        %v677 = vsel %vm554, %v676, %v652
        %v678 = vsel %vm553, %v551, %v675
        %v679 = vsel %vm553, 0, %v677
        %v680 = vmul.f32 %v678, %v678
        %v681 = vmul.f32 %v680, -0.001358992
        %v682 = vadd.f32 %v681, 0.041655596
        %v683 = vmul.f32 %v680, %v682
        %v684 = vadd.f32 %v683, -0.4999988
        %v685 = vmul.f32 %v680, %v684
        %v686 = vadd.f32 1.0, %v685
        %v687 = vmul.f32 %v678, %v678
        %v688 = vmul.f32 %v687, -0.00019511016
        %v689 = vadd.f32 %v688, 0.008332121
        %v690 = vmul.f32 %v687, %v689
        %v691 = vadd.f32 %v690, -0.16666654
        %v692 = vmul.f32 %v687, %v691
        %v693 = vadd.f32 %v692, 1.0
        %v694 = vmul.f32 %v693, %v678
        %vm695 = vweird.f32 %v551
        %v696 = vand.u32 %v679, 3
        %vm697 = vcmp.lt.s32.totalorder %v696, 2
        %vm698 = vcmp.eq.s32.totalorder %v696, 0
        %v699 = vxor.u32 %v694, 2147483648
        %v700 = vsel %vm698, %v686, %v699
        %vm701 = vcmp.eq.s32.totalorder %v696, 2
        %v702 = vxor.u32 %v686, 2147483648
        %v703 = vsel %vm701, %v702, %v694
        %v704 = vsel %vm697, %v700, %v703
        %v705 = vsel %vm695, nan, %v704
        %v706 = vmul.f32 %v233, 0.017453292
        %v707 = vand.u32 2147483647, %v706
        %vm708 = vcmp.le.f32.partialorder %v707, 0.7853982
        %vm709 = vcmp.lt.s32.totalorder %v706, 0
        %v710 = vand.u32 %v706, 2139095040
        %v711 = vshrl.u32 %v710, 23
        %v712 = vsub.s32 %v711, 127
        %v713 = vand.u32 2147483647, %v706
        %v714 = vand.u32 %v713, 8388607
        %v715 = vor.u32 %v714, 8388608
        %v716 = vsub.s32 0, %v715
        %v717 = vadd.s32 %v712, 1
        %vm718 = vcmp.gt.s32.totalorder %v717, 0
        %v719 = vsel %vm718, %v717, 0
        %v720 = vshrl.u32 %v719, 5
        %v721 = vand.u32 %v719, 31
        %v722 = vsub.s32 32, %v721
        %v723 = vshrl.u32 683565275, %v722
        %v724 = vshll.u32 683565275, %v721
        %v725 = vshrl.u32 2475754826, %v722
        %v726 = vor.u32 %v724, %v725
        %v727 = vshll.u32 2475754826, %v721
        %v728 = vshrl.u32 2131351028, %v722
        %v729 = vor.u32 %v727, %v728
        %v730 = vshll.u32 2131351028, %v721
        %v731 = vshrl.u32 2102212464, %v722
        %v732 = vor.u32 %v730, %v731
        %v733 = vshll.u32 2102212464, %v721
        %v734 = vshrl.u32 920167782, %v722
        %v735 = vor.u32 %v733, %v734
        %v736 = vshll.u32 920167782, %v721
        %v737 = vshrl.u32 1326507024, %v722
        %v738 = vor.u32 %v736, %v737
        %vm739 = vcmp.lt.s32.totalorder %v720, 1
        %vm740 = vcmp.lt.s32.totalorder %v720, 2
        %vm741 = vcmp.lt.s32.totalorder %v720, 3
        %vm742 = vcmp.lt.s32.totalorder %v720, 4
        %v743 = vsel %vm739, %v723, %v726
        %v744 = vsel %vm742, %v732, 2102212464
        %v745 = vsel %vm741, %v729, %v744
        %v746 = vsel %vm740, %v743, %v745
        %v747 = vsel %vm739, %v726, %v729
        %v748 = vsel %vm742, %v735, 920167782
        %v749 = vsel %vm741, %v732, %v748
        %v750 = vsel %vm740, %v747, %v749
        %v751 = vsel %vm739, %v729, %v732
        %v752 = vsel %vm742, %v738, 1326507024
        %v753 = vsel %vm741, %v735, %v752
        %v754 = vsel %vm740, %v751, %v753
        %v755 = vshll.u32 %v715, 8
        %v756 = vand.u32 %v755, 65535
        %v757 = vshrl.u32 %v755, 16
        %v758 = vand.u32 %v754, 65535
        %v759 = vshrl.u32 %v754, 16
        %v760 = vmul.u32 %v756, %v758
        %v761 = vmul.u32 %v756, %v759
        %v762 = vmul.u32 %v757, %v758
        %v763 = vmul.u32 %v757, %v759
        %v764 = vshll.u32 %v761, 16
        %v765 = vshrl.u32 %v761, 16
        %v766 = vshll.u32 %v762, 16
        %v767 = vshrl.u32 %v762, 16
        %vm768 = vc.u32 %v760, %v764
        %v769 = vsel %vm768, 1, 0
        %v770 = vadd.s32 %v760, %v764
        %v771 = vadd.s32 %v763, %v769
        %vm772 = vc.u32 %v770, %v766
        %v773 = vsel %vm772, 1, 0
        %v774 = vadd.s32 %v770, %v766
        %v775 = vadd.s32 %v771, %v773
        %v776 = vadd.s32 %v775, %v765
        %v777 = vadd.s32 %v776, %v767
        %v778 = vand.u32 %v755, 65535
        %v779 = vshrl.u32 %v755, 16
        %v780 = vand.u32 %v750, 65535
        %v781 = vshrl.u32 %v750, 16
        %v782 = vmul.u32 %v778, %v780
        %v783 = vmul.u32 %v778, %v781
        %v784 = vmul.u32 %v779, %v780
        %v785 = vmul.u32 %v779, %v781
        %v786 = vshll.u32 %v783, 16
        %v787 = vshrl.u32 %v783, 16
        %v788 = vshll.u32 %v784, 16
        %v789 = vshrl.u32 %v784, 16
        %vm790 = vc.u32 %v782, %v786
        %v791 = vsel %vm790, 1, 0
        %v792 = vadd.s32 %v782, %v786
        %v793 = vadd.s32 %v785, %v791
        %vm794 = vc.u32 %v792, %v788
        %v795 = vsel %vm794, 1, 0
        %v796 = vadd.s32 %v792, %v788
        %v797 = vadd.s32 %v793, %v795
        %v798 = vadd.s32 %v797, %v787
        %v799 = vadd.s32 %v798, %v789
        %v800 = vmul.u32 %v755, %v746
        %v801 = vadd.s32 %v777, %v796
        %vm802 = vc.u32 %v777, %v796
        %v803 = vadd.s32 %v799, 1
        %v804 = vsel %vm802, %v803, %v799
        %v805 = vadd.s32 %v800, %v804
        %v806 = vadd.s32 %v805, 536870912
        %v807 = vshrl.u32 %v806, 30
        %v808 = vshll.u32 %v807, 30
        %v809 = vsub.s32 %v805, %v808
        %vm810 = vcmp.lt.s32.totalorder %v809, 0
        %v811 = vsub.s32 0, %v809
        %v812 = vsel %vm810, %v811, %v809
        %v813 = vclz %v812
        %v814 = vsub.s32 %v813, 2
        %vm815 = vcmp.gt.s32.totalorder 0, %v814
        %v816 = vsel %vm815, 0, %v814
        %v817 = vsub.s32 32, %v816
        %v818 = vshll.u32 %v809, %v816
        %v819 = vshrl.u32 %v801, %v817
        %v820 = vor.u32 %v818, %v819
        %v821 = vsub.s32 4294967266, %v816
        %v822 = vadd.s32 %v821, 127
        %v823 = vshll.u32 %v822, 23
        %v824 = vor.u32 4788187, %v823
        %v825 = vand.u32 2147483647, %v824
        %v827 = vcvt.s32.f32 %v820
        %v828 = vmul.f32 %v827, %v825
        %v829 = vxor.u32 %v828, 2147483648
        %v830 = vsel %vm709, %v829, %v828
        %v831 = vsub.s32 4, %v807
        %v832 = vsel %vm709, %v831, %v807
        %v833 = vsel %vm708, %v706, %v830
        %v834 = vsel %vm708, 0, %v832
        %v835 = vmul.f32 %v833, %v833
        %v836 = vmul.f32 %v835, -0.001358992
        %v837 = vadd.f32 %v836, 0.041655596
        %v838 = vmul.f32 %v835, %v837
        %v839 = vadd.f32 %v838, -0.4999988
        %v840 = vmul.f32 %v835, %v839
        %v841 = vadd.f32 1.0, %v840
        %v842 = vmul.f32 %v833, %v833
        %v843 = vmul.f32 %v842, -0.00019511016
        %v844 = vadd.f32 %v843, 0.008332121
        %v845 = vmul.f32 %v842, %v844
        %v846 = vadd.f32 %v845, -0.16666654
        %v847 = vmul.f32 %v842, %v846
        %v848 = vadd.f32 %v847, 1.0
        %v849 = vmul.f32 %v848, %v833
        %vm850 = vweird.f32 %v706
        %v851 = vand.u32 %v834, 3
        %vm852 = vcmp.lt.s32.totalorder %v851, 2
        %vm853 = vcmp.eq.s32.totalorder %v851, 0
        %v854 = vxor.u32 %v849, 2147483648
        %v855 = vsel %vm853, %v841, %v854
        %vm856 = vcmp.eq.s32.totalorder %v851, 2
        %v857 = vxor.u32 %v841, 2147483648
        %v858 = vsel %vm856, %v857, %v849
        %v859 = vsel %vm852, %v855, %v858
        %v860 = vsel %vm850, nan, %v859
        %v861 = vmul.f32 %v705, %v860
        %v862 = vmul.f32 %v549, %v549
        %v863 = vmul.f32 %v861, %v862
        %v864 = vadd.f32 %v550, %v863
        %v865 = vmax.f32 %v864, 0.0
        %v866 = vmin.f32 %v865, 1.0
        %v867 = vrsqrt.pop %v866
        %v868 = vmul.f32 %v867, %v866
        %v869 = vmul.f32 %v868, %v867
        %v870 = vmul.f32 0.5, %v869
        %v871 = vsub.f32 1.5, %v870
        %v872 = vmul.f32 %v867, %v871
        %v873 = vmul.f32 %v866, %v872
        %vm874 = vcmp.eq.f32.partialorder %v866, inf
        %v875 = vsel %vm874, %v866, %v873
        %vm876 = vcmp.eq.f32.partialorder %v866, 0.0
        %v877 = vand.u32 %v866, 2147483648
        %v878 = vsel %vm876, %v877, %v875
        %v879 = vsub.f32 1.0, %v866
        %v880 = vrsqrt.pop %v879
        %v881 = vmul.f32 %v880, %v879
        %v882 = vmul.f32 %v881, %v880
        %v883 = vmul.f32 0.5, %v882
        %v884 = vsub.f32 1.5, %v883
        %v885 = vmul.f32 %v880, %v884
        %v886 = vmul.f32 %v879, %v885
        %vm887 = vcmp.eq.f32.partialorder %v879, inf
        %v888 = vsel %vm887, %v879, %v886
        %vm889 = vcmp.eq.f32.partialorder %v879, 0.0
        %v890 = vand.u32 %v879, 2147483648
        %v891 = vsel %vm889, %v890, %v888
        %v892 = vand.u32 2147483647, %v891
        %v893 = vand.u32 2147483647, %v878
        %v894 = vmin.f32 %v892, %v893
        %v895 = vmax.f32 %v892, %v893
        %v896 = vrcp.pop %v895
        %v897 = vmul.f32 %v895, %v896
        %v898 = vsub.f32 1.0, %v897
        %v899 = vmul.f32 %v896, %v898
        %v900 = vadd.f32 %v896, %v899
        %vm901 = vweird.f32 %v895
        %vm902 = vweird.f32 %v896
        %vm903 = vmor %vm901, %vm902
        %v904 = vsel %vm903, %v896, %v900
        %v905 = vand.u32 2147483647, %v895
        %vm906 = vcmp.eq.f32.partialorder %v905, 8.507059e+37
        %v907 = vand.u32 %v895, 2147483648
        %v908 = vor.u32 1.1754944e-38, %v907
        %v909 = vsel %vm906, %v908, %v904
        %v910 = vmul.f32 %v894, %v909
        %v911 = vmul.f32 %v910, %v910
        %v912 = vmul.f32 0.002785687, %v911
        %v913 = vadd.f32 %v912, -0.015866
        %v914 = vmul.f32 %v913, %v911
        %v915 = vadd.f32 %v914, 0.04247222
        %v916 = vmul.f32 %v915, %v911
        %v917 = vadd.f32 %v916, -0.074975304
        %v918 = vmul.f32 %v917, %v911
        %v919 = vadd.f32 %v918, 0.1064488
        %v920 = vmul.f32 %v919, %v911
        %v921 = vadd.f32 %v920, -0.14207031
        %v922 = vmul.f32 %v921, %v911
        %v923 = vadd.f32 %v922, 0.19993454
        %v924 = vmul.f32 %v923, %v911
        %v925 = vadd.f32 %v924, -0.33333147
        %v926 = vmul.f32 %v925, %v911
        %v927 = vmul.f32 %v926, %v910
        %v928 = vadd.f32 %v927, %v910
        %vm929 = vcmp.gt.f32.partialorder %v893, %v892
        %v930 = vsub.f32 1.5707964, %v928
        %v931 = vsel %vm929, %v930, %v928
        %vm932 = vcmp.lt.f32.partialorder %v891, 0.0
        %v933 = vsub.f32 3.1415927, %v931
        %v934 = vsel %vm932, %v933, %v931
        %vm935 = vcmp.lt.s32.totalorder %v891, 0
        %v936 = vsel %vm935, 3.1415927, 0.0
        %vm937 = vcmp.eq.f32.partialorder %v878, 0.0
        %v938 = vsel %vm937, %v936, %v934
        %vm939 = vcmp.ne.f32.partialorder %v891, %v891
        %vm940 = vcmp.ne.f32.partialorder %v878, %v878
        %vm941 = vmor %vm939, %vm940
        %v942 = vsel %vm941, nan, %v938
        %vm943 = vcmp.lt.f32.partialorder %v891, 0.0
        %v944 = vsel %vm943, 2.3561945, 0.7853982
        %vm945 = vcmp.eq.s32.totalorder %v892, inf
        %vm946 = vcmp.eq.s32.totalorder %v893, inf
        %vm947 = vmand %vm945, %vm946
        %v948 = vsel %vm947, %v944, %v942
        %v949 = vand.u32 2147483647, %v948
        %v950 = vand.u32 %v878, 2147483648
        %v951 = vor.u32 %v949, %v950
        %v952 = vld [vmem:[#allocation2] sm:$0x1]
        %953 = vadd.xlane.f32.xlu0 %v951
        %v954 = vpop.xlane.xlu0 %953
        %v955 = vrot.slane %v954, 4
        %v956 = vadd.f32 %v954, %v955
        %v957 = vrot.slane %v956, 2
        %v958 = vadd.f32 %v956, %v957
        %v959 = vrot.slane %v958, 1
        %v960 = vadd.f32 %v958, %v959
        %s961 = vtos %v960
        %v962 = vstv %s961
        %v963 = vadd.f32 %v952, %v962
        %vm964 = vcmask 0
        %965 = vst.msk [vmem:[#allocation2] sm:$0x1] %vm964, %v963
        // Predicated region
        $region41: #{tpu_custom_call.1} parent=27 // pred_check
          %p966 = pneg %p224
        $region42: #{tpu_custom_call.1} parent=27 // pred_check_branch
          %968 = sbr.rel (%p966) target = $region44
        $region43: #{tpu_custom_call.1} parent=27 // pred_region
          %v969 = vld [vmem:[#allocation2] sm:$0x1]
          %v971 = vperm.slane %v969, 0
          %972 = vset.pattern.permute.xlu0 0
          %973 = vperm.xlu0 %972, %v971
          %v974 = vpop.permute.xlu0 %973
          %976 = vst [vmem:[%s221] sm:$0xff] %v974
        $region44: #{tpu_custom_call.1} parent=27 // pred_fallthru
          _
        %s977 = sand.u32 %s98, 1
        %s978 = scalar_lea.sflag [#allocation5], %s977
        %s979 = sand.u32 %s98, 1
        %s980 = smul.addr %s979, 8
        %s981 = scalar_lea.vmem [#allocation8], %s980
        // Predicated region
        $region45: #{tpu_custom_call.1} parent=27 // pred_check
          %p982 = pneg %p108
        $region46: #{tpu_custom_call.1} parent=27 // pred_check_branch
          %984 = sbr.rel (%p982) target = $region48
        $region47: #{tpu_custom_call.1} parent=27 // pred_region
          %986 = vsyncadd %s978, 0
          %s987 = smul.addr %s26, 8
          %s988 = scalar_lea.hbm %s2, %s987
          %s990 = sshll.u32 %s981, 4
          %s991 = int_to_ptr.vmem [resolvable:$true] %s990
          %s992 = sshll.u32 %s988, 4
          %s993 = int_to_ptr.hbm [resolvable:$true] %s992
          %995 = dma.vmem_to_hbm [thread:$0]  %s991, 128, %s993, %s978
        $region48: #{tpu_custom_call.1} parent=27 // pred_fallthru
          _
      $region28: #{tpu_custom_call.1} parent=5 // pred_fallthru
        _
      %p996 = scmp.le.s32.totalorder 2, %s17
      // Predicated region
      $region49: #{tpu_custom_call.1} parent=5 // pred_check
        %p997 = pneg %p996
      $region50: #{tpu_custom_call.1} parent=5 // pred_check_branch
        %999 = sbr.rel (%p997) target = $region52
      $region51: #{tpu_custom_call.1} parent=5 // pred_region
        %s1000 = ssub.s32 %s17, 2
        // Predicated region
        $region53: #{tpu_custom_call.1} parent=51 // pred_check
          %p1001 = pneg %p114
        $region54: #{tpu_custom_call.1} parent=51 // pred_check_branch
          %1003 = sbr.rel (%p1001) target = $region56
        $region55: #{tpu_custom_call.1} parent=51 // pred_region
          %s1004 = sand.u32 %s99, 1
          %s1005 = scalar_lea.sflag [#allocation5], %s1004
          %s1006 = sand.u32 %s99, 1
          %s1007 = smul.addr %s1006, 8
          %s1008 = scalar_lea.vmem [#allocation8], %s1007
          %1010 = dma.done %s1005, 128
        $region56: #{tpu_custom_call.1} parent=51 // pred_fallthru
          _
      $region52: #{tpu_custom_call.1} parent=5 // pred_fallthru
        _
    $region6: #{tpu_custom_call.1} parent=1 // loop_footer
      %s21 = sadd.s32 1, %s17
    $region7: #{tpu_custom_call.1} parent=1 // loop_footer_branch
      %16 = sbr.rel target = $region3
    $region8: #{tpu_custom_call.1} parent=1 // loop_exit
      _
    %1011 = vsyncpa [#allocation4], 1
    %s1012 = scalar_lea.sflag [#allocation4], 1
    %1013 = vsyncpa %s1012, 1
    %1014 = vsyncpa [#allocation7], 1
    %s1015 = scalar_lea.sflag [#allocation7], 1
    %1016 = vsyncpa %s1015, 1
    %1017 = vsyncpa [#allocation5], 1
    %s1018 = scalar_lea.sflag [#allocation5], 1
    %1019 = vsyncpa %s1018, 1

</llo_original>
